<compile_context>
chip_gen: v5e
topology: v5e:2x2
jax: 0.10.0
libtpu: 0.0.40
codegen_flags: <defaults>
</compile_context>

<pallas_src>
import numpy as np
import jax
import jax.numpy as jnp
from jax import lax
from jax.experimental import pallas as pl
from jax.experimental.pallas import tpu as pltpu

MIN_OVERLAP = 0.7          # _gaussian_radius default
GAUSS_EPS = 2e-15          # gaussian2D zero threshold (h[h < 2e-15] = 0)
X_LIMIT = 152.0            # hard-coded bounds in ForwardWarp.forward (independent of W/H!)
Y_LIMIT = 272.0
NPARAM = 4                 # [x_int, y_int, radius, 1/(2*sigma^2)] per compacted object


def _pick_tile_h(H):
    """Largest row tile (multiple of 8) that divides H and gives >= 2 tiles; else whole H."""
    for t in (32, 16, 8):
        if H % t == 0 and H // t >= 2:
            return t
    return H


# ----------------------------------------------------------------------------- wrapper math
def _object_params(flow, mask, index, wh):
    """Per-object scalar parameters, compacted so valid objects come first in each batch row.

    Returns:
      params_flat: (B*K*NPARAM,) float32  -> 1-D SMEM table
      n_valid:     (B,) int32             -> dynamic per-batch loop bound
    """
    B, C, H, W = flow.shape
    K = index.shape[1]

    # _tranpose_and_gather_feat
    feat = jnp.transpose(flow, (0, 2, 3, 1)).reshape(B, H * W, C)
    ind = jnp.broadcast_to(index.astype(jnp.int32)[..., None], (B, K, C))
    pred = jnp.take_along_axis(feat, ind, axis=1).astype(jnp.float32)      # (B, K, C)

    m = mask.astype(jnp.float32)[..., None]
    xy = pred * m
    whm = wh.astype(jnp.float32) * m

    w = whm[..., 0] + whm[..., 2]
    h = whm[..., 1] + whm[..., 3]
    x = xy[..., 0]
    y = xy[..., 1]

    valid = ((h > 0) & (w > 0) & (x > 0) & (y > 0)
             & (x < X_LIMIT) & (y < Y_LIMIT))

    hh = jnp.where(valid, jnp.ceil(h), 1.0)          # guard sqrt() for invalid objects
    ww = jnp.where(valid, jnp.ceil(w), 1.0)

    # _gaussian_radius (keeps the original's "/2" on all three roots)
    b1 = hh + ww
    c1 = ww * hh * (1.0 - MIN_OVERLAP) / (1.0 + MIN_OVERLAP)
    r1 = (b1 + jnp.sqrt(b1 * b1 - 4.0 * c1)) / 2.0
    b2 = 2.0 * (hh + ww)
    c2 = (1.0 - MIN_OVERLAP) * ww * hh
    r2 = (b2 + jnp.sqrt(b2 * b2 - 16.0 * c2)) / 2.0
    a3 = 4.0 * MIN_OVERLAP
    b3 = -2.0 * MIN_OVERLAP * (hh + ww)
    c3 = (MIN_OVERLAP - 1.0) * ww * hh
    r3 = (b3 + jnp.sqrt(b3 * b3 - 4.0 * a3 * c3)) / 2.0
    radius = jnp.minimum(jnp.minimum(r1, r2), r3)
    radius = jnp.floor(jnp.maximum(radius, 0.0))     # clamp(min=0) then int() truncation

    sigma = (2.0 * radius + 1.0) / 6.0               # sigma = diameter / 6
    inv_2s2 = 1.0 / (2.0 * sigma * sigma)

    params = jnp.stack([jnp.trunc(x), jnp.trunc(y), radius, inv_2s2], axis=-1)  # (B, K, 4)

    # Compact valid objects to the front of each batch row (order irrelevant: max is commutative).
    order = jnp.argsort((~valid).astype(jnp.int32), axis=1)                 # valid first
    params = jnp.take_along_axis(params, order[..., None], axis=1)
    n_valid = jnp.sum(valid, axis=1).astype(jnp.int32)

    return params.reshape(B * K * NPARAM).astype(jnp.float32), n_valid


# ----------------------------------------------------------------------------- Pallas kernel
def _make_render_kernel(H, W, K, tile_h):
    def kernel(nvalid_ref, params_ref, o_ref):
        b = pl.program_id(0)
        t = pl.program_id(1)
        row0 = t * tile_h
        row0_f = row0.astype(jnp.float32)

        # Hoisted coordinate vectors for this row tile (computed once per grid step).
        rows = (lax.broadcasted_iota(jnp.int32, (tile_h, 1), 0) + row0).astype(jnp.float32)
        cols = lax.broadcasted_iota(jnp.int32, (1, W), 1).astype(jnp.float32)

        # Accumulate the elementwise-max splats directly in the output block.
        o_ref[...] = jnp.zeros_like(o_ref)

        n = nvalid_ref[b]                              # dynamic #valid objects for this batch

        @pl.loop(0, n)
        def _(k):
            base = (b * K + k) * NPARAM
            xk = params_ref[base + 0]                  # cheap scalar reads from SMEM
            yk = params_ref[base + 1]
            rad = params_ref[base + 2]
            inv_2s2 = params_ref[base + 3]

            # Scalar pre-check: does this object's (2r+1)^2 box touch this row tile / the image?
            row_hit = ((yk + rad) >= row0_f) & ((yk - rad) <= (row0_f + (tile_h - 1)))
            col_hit = (xk - rad) <= (W - 1)            # x may lie in [W, 152): fully off-image
            hit = row_hit & col_hit

            @pl.when(hit)
            def _():
                dy = rows - yk                                  # (tile_h, 1)
                dx = cols - xk                                  # (1, W)
                gy = jnp.exp(-(dy * dy) * inv_2s2)              # tile_h exps (EUP)
                gx = jnp.exp(-(dx * dx) * inv_2s2)              # W exps (EUP)
                g = gy * gx                                     # separable 2-D Gaussian (VALU)
                inside = (jnp.abs(dy) <= rad) & (jnp.abs(dx) <= rad)   # (2r+1)^2 clipped box
                g = jnp.where(inside & (g >= GAUSS_EPS), g, 0.0)       # fused box + eps select
                o_ref[0, 0] = jnp.maximum(o_ref[0, 0], g)              # torch.max splat

    return kernel


def forward_warp_pallas(flow, mask, index, wh):
    """flow: (B,2,H,W); mask: (B,K); index: (B,K) int; wh: (B,K,4). Returns hm (B,1,H,W)."""
    B, C, H, W = flow.shape
    K = index.shape[1]
    params_flat, n_valid = _object_params(flow, mask, index, wh)

    tile_h = _pick_tile_h(H)
    n_tiles = H // tile_h

    return pl.pallas_call(
        _make_render_kernel(H, W, K, tile_h),
        out_shape=jax.ShapeDtypeStruct((B, 1, H, W), jnp.float32),
        grid=(B, n_tiles),
        in_specs=[pl.BlockSpec(memory_space=pltpu.MemorySpace.SMEM),   # n_valid (B,)
                  pl.BlockSpec(memory_space=pltpu.MemorySpace.SMEM)],  # flat param table
        out_specs=pl.BlockSpec((1, 1, tile_h, W), lambda b, t: (b, 0, t, 0)),
        compiler_params=pltpu.CompilerParams(
            dimension_semantics=("parallel", "parallel")),
    )(n_valid, params_flat)


# ----------------------------------------------------------------------------- numpy reference
def _gaussian_radius_np(hh, ww):
    b1 = hh + ww
    c1 = ww * hh * (1.0 - MIN_OVERLAP) / (1.0 + MIN_OVERLAP)
    r1 = (b1 + np.sqrt(b1 * b1 - 4.0 * c1)) / 2.0
    b2 = 2.0 * (hh + ww)
    c2 = (1.0 - MIN_OVERLAP) * ww * hh
    r2 = (b2 + np.sqrt(b2 * b2 - 16.0 * c2)) / 2.0
    a3 = 4.0 * MIN_OVERLAP
    b3 = -2.0 * MIN_OVERLAP * (hh + ww)
    c3 = (MIN_OVERLAP - 1.0) * ww * hh
    r3 = (b3 + np.sqrt(b3 * b3 - 4.0 * a3 * c3)) / 2.0
    return np.minimum(np.minimum(r1, r2), r3)


def _draw_umich_gaussian_np(heatmap, x, y, radius):
    diameter = 2 * radius + 1
    sigma = diameter / 6.0
    m = (diameter - 1.0) / 2.0
    ax = np.arange(-m, m + 1, dtype=np.float32)
    gaussian = np.exp(-(ax[:, None] ** 2 + ax[None, :] ** 2)
                      / np.float32(2.0 * sigma * sigma))
    gaussian[gaussian < GAUSS_EPS] = 0.0
    height, width = heatmap.shape
    left, right = min(x, radius), min(width - x, radius + 1)
    top, bottom = min(y, radius), min(height - y, radius + 1)
    masked_g = gaussian[radius - top:radius + bottom, radius - left:radius + right]
    roi = heatmap[y - top:y + bottom, x - left:x + right]
    if min(masked_g.shape) > 0 and min(roi.shape) > 0:
        heatmap[y - top:y + bottom, x - left:x + right] = np.maximum(roi, masked_g)


def forward_warp_reference(flow, mask, index, wh):
    flow = np.asarray(flow, dtype=np.float32)
    mask_f = np.asarray(mask, dtype=np.float32)
    index = np.asarray(index)
    wh = np.asarray(wh, dtype=np.float32)
    B, C, H, W = flow.shape
    K = index.shape[1]

    feat = np.transpose(flow, (0, 2, 3, 1)).reshape(B, H * W, C)
    pred = np.stack([feat[b, index[b]] for b in range(B)], axis=0)      # (B, K, C)
    xy = pred * mask_f[..., None]
    whm = wh * mask_f[..., None]

    w = whm[..., 0] + whm[..., 2]
    h = whm[..., 1] + whm[..., 3]
    x = xy[..., 0]
    y = xy[..., 1]
    valid = (h > 0) & (w > 0) & (x > 0) & (y > 0) & (x < X_LIMIT) & (y < Y_LIMIT)

    hh = np.where(valid, np.ceil(h), 1.0).astype(np.float32)
    ww = np.where(valid, np.ceil(w), 1.0).astype(np.float32)
    radius = np.floor(np.maximum(_gaussian_radius_np(hh, ww), 0.0))

    hm = np.zeros((B, 1, H, W), dtype=np.float32)
    for b in range(B):
        for k in range(K):
            if valid[b, k]:
                _draw_umich_gaussian_np(hm[b, 0], int(x[b, k]), int(y[b, k]),
                                        int(radius[b, k]))
    return hm


# ----------------------------------------------------------------------------- main
if __name__ == "__main__":
    B, C, H, W, K = 2, 2, 16, 16, 8
    key = jax.random.PRNGKey(0)
    k1, k2, k3, k4 = jax.random.split(key, 4)
    flow = jax.random.uniform(k1, (B, C, H, W), dtype=jnp.float32,
                              minval=0.0, maxval=float(H))          # predicted center coords
    wh = jax.random.uniform(k2, (B, K, 4), dtype=jnp.float32,
                            minval=0.0, maxval=6.0)                 # box extents
    index = jax.random.randint(k3, (B, K), 0, H * W, dtype=jnp.int32)
    mask = (jax.random.uniform(k4, (B, K)) > 0.3).astype(jnp.float32)

    out = jax.jit(forward_warp_pallas)(flow, mask, index, wh)
    out = jax.block_until_ready(out)

    ref = forward_warp_reference(flow, mask, index, wh)
    assert out.shape == (B, 1, H, W)
    np.testing.assert_allclose(np.asarray(out), ref, atol=1e-4, rtol=1e-4)
    print("KERNEL_OK")
</pallas_src>

<mosaic_0001>
module attributes {stable_mosaic.version = 11 : i64} {
  func.func @kernel(%arg0: i32, %arg1: i32, %arg2: memref<2xi32, #tpu.memory_space<smem>>, %arg3: memref<64xf32, #tpu.memory_space<smem>>, %arg4: memref<1x1x8x16xf32, #tpu.memory_space<vmem>>) attributes {dimension_semantics = [#tpu.dimension_semantics<parallel>, #tpu.dimension_semantics<parallel>], iteration_bounds = array<i64: 2, 2>, scalar_prefetch = 0 : i64, scratch_operands = 0 : i64, tpu.core_type = #tpu.core_type<tc>, window_params = [{transform_indices = @transform_0, window_bounds = array<i64: 2>}, {transform_indices = @transform_1, window_bounds = array<i64: 64>}, {transform_indices = @transform_2, window_bounds = array<i64: 1, 1, 8, 16>}]} {
    %c8_i32 = arith.constant 8 : i32
    %0 = arith.muli %arg1, %c8_i32 : i32
    %1 = arith.sitofp %0 : i32 to f32
    %2 = tpu.iota {dimensions = array<i32: 0>} : vector<8x1xi32>
    %3 = vector.broadcast %0 : i32 to vector<8x1xi32>
    %4 = arith.addi %2, %3 : vector<8x1xi32>
    %5 = arith.sitofp %4 : vector<8x1xi32> to vector<8x1xf32>
    %6 = tpu.iota {dimensions = array<i32: 1>} : vector<1x16xi32>
    %7 = arith.sitofp %6 : vector<1x16xi32> to vector<1x16xf32>
    %cst = arith.constant 0.000000e+00 : f32
    %8 = vector.broadcast %cst : f32 to vector<1x1x8x16xf32>
    %c0 = arith.constant 0 : index
    %c0_0 = arith.constant 0 : index
    %c0_1 = arith.constant 0 : index
    %c0_2 = arith.constant 0 : index
    %9 = vector.load %arg4[%c0, %c0_0, %c0_1, %c0_2] : memref<1x1x8x16xf32, #tpu.memory_space<vmem>>, vector<1x1x8x16xf32>
    tpu.vector_store %arg4[%c0, %c0_0, %c0_1, %c0_2], %8 {strides = array<i32>} : memref<1x1x8x16xf32, #tpu.memory_space<vmem>>, vector<1x1x8x16xf32>,
    %10 = arith.index_cast %arg0 : i32 to index
    %11 = memref.load %arg2[%10] : memref<2xi32, #tpu.memory_space<smem>>
    %c0_i32 = arith.constant 0 : i32
    %12 = arith.subi %11, %c0_i32 : i32
    %c1_i32 = arith.constant 1 : i32
    %c1_i32_3 = arith.constant 1 : i32
    %13 = arith.subi %c1_i32, %c1_i32_3 : i32
    %14 = arith.addi %12, %13 : i32
    %c1_i32_4 = arith.constant 1 : i32
    %15 = arith.divsi %14, %c1_i32_4 : i32
    %c1_i32_5 = arith.constant 1 : i32
    %c0_i32_6 = arith.constant 0 : i32
    %c0_i32_7 = arith.constant 0 : i32
    %16 = arith.subi %15, %c0_i32_7 : i32
    %17 = arith.addi %c0_i32_7, %16 : i32
    %c1_i32_8 = arith.constant 1 : i32
    scf.for %arg5 = %c0_i32_7 to %17 step %c1_i32_8  : i32 {
      %18 = arith.muli %arg5, %c1_i32_5 : i32
      %19 = arith.addi %c0_i32_6, %18 : i32
      %c8_i32_9 = arith.constant 8 : i32
      %20 = arith.muli %arg0, %c8_i32_9 : i32
      %21 = arith.addi %20, %19 : i32
      %c4_i32 = arith.constant 4 : i32
      %22 = arith.muli %21, %c4_i32 : i32
      %c0_i32_10 = arith.constant 0 : i32
      %23 = arith.addi %22, %c0_i32_10 : i32
      %24 = arith.index_cast %23 : i32 to index
      %25 = memref.load %arg3[%24] : memref<64xf32, #tpu.memory_space<smem>>
      %c1_i32_11 = arith.constant 1 : i32
      %26 = arith.addi %22, %c1_i32_11 : i32
      %27 = arith.index_cast %26 : i32 to index
      %28 = memref.load %arg3[%27] : memref<64xf32, #tpu.memory_space<smem>>
      %c2_i32 = arith.constant 2 : i32
      %29 = arith.addi %22, %c2_i32 : i32
      %30 = arith.index_cast %29 : i32 to index
      %31 = memref.load %arg3[%30] : memref<64xf32, #tpu.memory_space<smem>>
      %c3_i32 = arith.constant 3 : i32
      %32 = arith.addi %22, %c3_i32 : i32
      %33 = arith.index_cast %32 : i32 to index
      %34 = memref.load %arg3[%33] : memref<64xf32, #tpu.memory_space<smem>>
      %35 = arith.addf %28, %31 : f32
      %36 = arith.cmpf oge, %35, %1 : f32
      %37 = arith.subf %28, %31 : f32
      %cst_12 = arith.constant 7.000000e+00 : f32
      %38 = arith.addf %1, %cst_12 : f32
      %39 = arith.cmpf ole, %37, %38 : f32
      %40 = arith.andi %36, %39 : i1
      %41 = arith.subf %25, %31 : f32
      %cst_13 = arith.constant 1.500000e+01 : f32
      %42 = arith.cmpf ole, %41, %cst_13 : f32
      %43 = arith.andi %40, %42 : i1
      %44 = arith.extui %43 : i1 to i32
      %c0_i32_14 = arith.constant 0 : i32
      %45 = arith.cmpi ne, %44, %c0_i32_14 : i32
      scf.if %45 {
        %46 = vector.broadcast %28 : f32 to vector<8x1xf32>
        %47 = arith.subf %5, %46 : vector<8x1xf32>
        %48 = vector.broadcast %25 : f32 to vector<1x16xf32>
        %49 = arith.subf %7, %48 : vector<1x16xf32>
        %50 = arith.mulf %47, %47 : vector<8x1xf32>
        %cst_15 = arith.constant 0.000000e+00 : f32
        %51 = vector.broadcast %cst_15 : f32 to vector<8x1xf32>
        %52 = arith.subf %51, %50 : vector<8x1xf32>
        %53 = vector.broadcast %34 : f32 to vector<8x1xf32>
        %54 = arith.mulf %52, %53 : vector<8x1xf32>
        %55 = math.exp %54 : vector<8x1xf32>
        %56 = arith.mulf %49, %49 : vector<1x16xf32>
        %cst_16 = arith.constant 0.000000e+00 : f32
        %57 = vector.broadcast %cst_16 : f32 to vector<1x16xf32>
        %58 = arith.subf %57, %56 : vector<1x16xf32>
        %59 = vector.broadcast %34 : f32 to vector<1x16xf32>
        %60 = arith.mulf %58, %59 : vector<1x16xf32>
        %61 = math.exp %60 : vector<1x16xf32>
        %62 = vector.broadcast %55 : vector<8x1xf32> to vector<8x16xf32>
        %63 = vector.broadcast %61 : vector<1x16xf32> to vector<8x16xf32>
        %64 = arith.mulf %62, %63 : vector<8x16xf32>
        %65 = math.absf %47 : vector<8x1xf32>
        %66 = vector.broadcast %31 : f32 to vector<8x1xf32>
        %67 = arith.cmpf ole, %65, %66 : vector<8x1xf32>
        %68 = math.absf %49 : vector<1x16xf32>
        %69 = vector.broadcast %31 : f32 to vector<1x16xf32>
        %70 = arith.cmpf ole, %68, %69 : vector<1x16xf32>
        %71 = vector.broadcast %67 : vector<8x1xi1> to vector<8x16xi1>
        %72 = vector.broadcast %70 : vector<1x16xi1> to vector<8x16xi1>
        %73 = arith.andi %71, %72 : vector<8x16xi1>
        %cst_17 = arith.constant 2.000000e-15 : f32
        %74 = vector.broadcast %cst_17 : f32 to vector<8x16xf32>
        %75 = arith.cmpf oge, %64, %74 : vector<8x16xf32>
        %76 = arith.andi %73, %75 : vector<8x16xi1>
        %cst_18 = arith.constant 0.000000e+00 : f32
        %77 = vector.broadcast %cst_18 : f32 to vector<8x16xf32>
        %78 = arith.select %76, %64, %77 : vector<8x16xi1>, vector<8x16xf32>
        %c0_19 = arith.constant 0 : index
        %c0_20 = arith.constant 0 : index
        %c0_21 = arith.constant 0 : index
        %c0_22 = arith.constant 0 : index
        %79 = vector.load %arg4[%c0_19, %c0_20, %c0_21, %c0_22] : memref<1x1x8x16xf32, #tpu.memory_space<vmem>>, vector<1x1x8x16xf32>
        %80 = vector.shape_cast %79 : vector<1x1x8x16xf32> to vector<8x16xf32>
        %81 = arith.maximumf %80, %78 : vector<8x16xf32>
        %c0_23 = arith.constant 0 : index
        %c0_24 = arith.constant 0 : index
        %c0_25 = arith.constant 0 : index
        %c0_26 = arith.constant 0 : index
        %82 = vector.load %arg4[%c0_23, %c0_24, %c0_25, %c0_26] : memref<1x1x8x16xf32, #tpu.memory_space<vmem>>, vector<1x1x8x16xf32>
        %83 = vector.shape_cast %82 : vector<1x1x8x16xf32> to vector<8x16xf32>
        %84 = vector.shape_cast %81 : vector<8x16xf32> to vector<1x1x8x16xf32>
        tpu.vector_store %arg4[%c0_23, %c0_24, %c0_25, %c0_26], %84 {strides = array<i32>} : memref<1x1x8x16xf32, #tpu.memory_space<vmem>>, vector<1x1x8x16xf32>,
      } else {
      }
    }
    return
  }
  func.func @transform_0(%arg0: i32, %arg1: i32) -> i32 {
    %c0_i32 = arith.constant 0 : i32
    %c0_i32_0 = arith.constant 0 : i32
    return %c0_i32 : i32
  }
  func.func @transform_1(%arg0: i32, %arg1: i32) -> i32 {
    %c0_i32 = arith.constant 0 : i32
    %c0_i32_0 = arith.constant 0 : i32
    return %c0_i32 : i32
  }
  func.func @transform_2(%arg0: i32, %arg1: i32) -> (i32, i32, i32, i32) {
    %c0_i32 = arith.constant 0 : i32
    %c0_i32_0 = arith.constant 0 : i32
    %c0_i32_1 = arith.constant 0 : i32
    return %arg0, %c0_i32, %arg1, %c0_i32_0 : i32, i32, i32, i32
  }
}

</mosaic_0001>

<llo_original>
// kernel: forward_warp_pallas.1
$region0: #{forward_warp_pallas.1}
  #allocation0 [shape = 'u32[]', space=smem, size = 0x4, offset = 0x4, fixed_abs, tag = 'smem constant byte address 0x4 - core index']
  #allocation1 [shape = 'u32[72,128]{1,0:T(1,128)}', space=vmem, size = 0x9000, scoped, tag = 'internal scratch']
  %s0 = inlined_call_operand.vmem [shape: s32[2], index: 0, kind: input, shape index: {}]
  %s1 = inlined_call_operand.vmem [shape: f32[64], index: 1, kind: input, shape index: {}]
  %s2 = inlined_call_operand.hbm [shape: f32[2,1,16,16], index: 2, kind: output, shape index: {}]
  %s3 = sld [smem:[#allocation0]]
  $region60: #{forward_warp_pallas.1} parent=0
    _
  %s5 = ssub.s32 1, %s3
  %s6 = scalar_select 0, %s5, %s3
  $region1: #{forward_warp_pallas.1} parent=0
    #allocation2 [shape = 'u8[512]{0}', space=smem, size = 0x200, scoped, tag = 'input window, operand 0, single buffered']
    #allocation3 [shape = 's32[2]{0}', space=sflag, size = 0x8, scoped, tag = 'scoped memory for forward_warp_pallas.1']
    #allocation4 [shape = 's32[2]{0}', space=sflag, size = 0x8, scoped, tag = 'scoped memory for forward_warp_pallas.1']
    #allocation5 [shape = 'u8[512]{0}', space=smem, size = 0x200, scoped, tag = 'input window, operand 1, single buffered']
    #allocation6 [shape = 's32[1]{0}', space=sflag, size = 0x4, scoped, tag = 'scoped memory for forward_warp_pallas.1']
    #allocation7 [shape = 'u8[8192]{0}', space=vmem, size = 0x2000, scoped, tag = 'output window, operand 0']
    %7 = vsyncpa [#allocation4], 0
    %8 = vsyncpa [#allocation6], 0
    %9 = vsyncpa [#allocation3], 0
    %s10 = scalar_lea.sflag [#allocation3], 1
    %11 = vsyncpa %s10, 0
    loop: start=0, step=1, limit=6
    $region2: #{forward_warp_pallas.1} parent=1 // loop_pre_header
      _
    $region3: #{forward_warp_pallas.1} parent=1 // loop_header
      %s13 = sphi 0, %s17
      %p14 = scmp.ge.s32.totalorder %s13, 6
      %s20 = sphi 0, %s32
      %s21 = sphi 0, %s28
      %s22 = sphi 0, %s20
      %s23 = sphi 0, %s21
      %s24 = sphi 0, %s22
      %s25 = sphi 0, %s23
      %s33 = sphi 0, %s33
      %s35 = sphi 0, %s33
      %s36 = sphi 0, %s35
      %s50 = sphi 0, %s36
      %s54 = sphi 0, %s54
      %s56 = sphi 0, %s54
      %s57 = sphi 0, %s56
      %s71 = sphi 0, %s57
      %s79 = sphi 0, %s81
      %s82 = sphi 0, %s79
      %s83 = sphi 0, %s82
      %s99 = sphi 0, %s83
    $region4: #{forward_warp_pallas.1} parent=1 // loop_header_branch
      %16 = sbr.rel (%p14) target = $region8
    $region5: #{forward_warp_pallas.1} parent=1 // loop_body
      %s18 = ssub.s32 %s13, 1
      %s19 = ssub.s32 %s13, 2
      %s26 = sadd.s32 1, %s21
      %p27 = scmp.ge.s32.totalorder %s26, 2
      %s28 = scalar_select %p27, 0, %s26
      %s29 = sadd.s32 1, %s20
      %s30 = scalar_select %p27, %s29, %s20
      %p31 = scmp.ge.s32.totalorder %s30, 2
      %s32 = scalar_select %p31, 0, %s30
      %s34 = sadd.s32 %s33, 1
      %p37 = scmp.eq.s32.totalorder %s13, 3
      %p38 = scmp.ne.s32.totalorder %s33, %s35
      %p39 = scmp.eq.s32.totalorder %s13, 0
      %p40 = por %p38, %p39
      %p41 = scmp.ne.s32.totalorder %s33, %s35
      %p42 = scmp.eq.s32.totalorder %s18, 3
      %p43 = por %p41, %p42
      %p44 = scmp.ne.s32.totalorder %s35, %s36
      %p45 = scmp.eq.s32.totalorder %s18, 0
      %p46 = por %p44, %p45
      %p47 = scmp.ne.s32.totalorder %s35, %s36
      %p48 = scmp.eq.s32.totalorder %s19, 3
      %p49 = por %p47, %p48
      %p51 = scmp.ne.s32.totalorder %s36, %s50
      %p52 = scmp.eq.s32.totalorder %s19, 0
      %p53 = por %p51, %p52
      %s55 = sadd.s32 %s54, 1
      %p58 = scmp.eq.s32.totalorder %s13, 3
      %p59 = scmp.ne.s32.totalorder %s54, %s56
      %p60 = scmp.eq.s32.totalorder %s13, 0
      %p61 = por %p59, %p60
      %p62 = scmp.ne.s32.totalorder %s54, %s56
      %p63 = scmp.eq.s32.totalorder %s18, 3
      %p64 = por %p62, %p63
      %p65 = scmp.ne.s32.totalorder %s56, %s57
      %p66 = scmp.eq.s32.totalorder %s18, 0
      %p67 = por %p65, %p66
      %p68 = scmp.ne.s32.totalorder %s56, %s57
      %p69 = scmp.eq.s32.totalorder %s19, 3
      %p70 = por %p68, %p69
      %p72 = scmp.ne.s32.totalorder %s57, %s71
      %p73 = scmp.eq.s32.totalorder %s19, 0
      %p74 = por %p72, %p73
      %s75 = ssub.s32 %s20, %s32
      %s76 = ssub.s32 %s21, %s28
      %s77 = sor.u32 %s75, %s76
      %p78 = scmp.eq.s32.totalorder %s77, 0
      %s80 = sadd.s32 %s79, 1
      %s81 = scalar_select %p78, %s79, %s80
      %p84 = pneg %p78
      %p85 = scmp.eq.s32.totalorder %s13, 3
      %p86 = por %p84, %p85
      %p87 = scmp.ne.s32.totalorder %s79, %s82
      %p88 = scmp.eq.s32.totalorder %s13, 0
      %p89 = por %p87, %p88
      %p90 = scmp.ne.s32.totalorder %s79, %s82
      %p91 = scmp.eq.s32.totalorder %s18, 3
      %p92 = por %p90, %p91
      %p93 = scmp.ne.s32.totalorder %s82, %s83
      %p94 = scmp.eq.s32.totalorder %s18, 0
      %p95 = por %p93, %p94
      %p96 = scmp.ne.s32.totalorder %s82, %s83
      %p97 = scmp.eq.s32.totalorder %s19, 3
      %p98 = por %p96, %p97
      %p100 = scmp.ne.s32.totalorder %s83, %s99
      %p101 = scmp.eq.s32.totalorder %s19, 0
      %p102 = por %p100, %p101
      %p103 = scmp.le.s32.totalorder 1, %s13
      %p104 = scmp.lt.s32.totalorder %s13, 5
      %p105 = pnand %p103, %p104
      %p106 = pneg %p105
      // Predicated region
      $region9: #{forward_warp_pallas.1} parent=5 // pred_check
        _
      $region10: #{forward_warp_pallas.1} parent=5 // pred_check_branch
        %108 = sbr.rel (%p105) target = $region12
      $region11: #{forward_warp_pallas.1} parent=5 // pred_region
        %s109 = ssub.s32 %s13, 1
        // Predicated region
        $region13: #{forward_warp_pallas.1} parent=11 // pred_check
          %p110 = pneg %p46
        $region14: #{forward_warp_pallas.1} parent=11 // pred_check_branch
          %112 = sbr.rel (%p110) target = $region16
        $region15: #{forward_warp_pallas.1} parent=11 // pred_region
          %114 = vsyncadd [#allocation4], 0
          %s116 = sshll.u32 %s0, 4
          %s117 = int_to_ptr.vmem [resolvable:$true] %s116
          %119 = dma.vmem_to_smem %s117, 16, [#allocation2], [#allocation4]
        $region16: #{forward_warp_pallas.1} parent=11 // pred_fallthru
          _
        // Predicated region
        $region17: #{forward_warp_pallas.1} parent=11 // pred_check
          %p120 = pneg %p67
        $region18: #{forward_warp_pallas.1} parent=11 // pred_check_branch
          %122 = sbr.rel (%p120) target = $region20
        $region19: #{forward_warp_pallas.1} parent=11 // pred_region
          %124 = vsyncadd [#allocation6], 0
          %s126 = sshll.u32 %s1, 4
          %s127 = int_to_ptr.vmem [resolvable:$true] %s126
          %129 = dma.vmem_to_smem %s127, 16, [#allocation5], [#allocation6]
        $region20: #{forward_warp_pallas.1} parent=11 // pred_fallthru
          _
      $region12: #{forward_warp_pallas.1} parent=5 // pred_fallthru
        _
      %p130 = scmp.lt.s32.totalorder %s13, 4
      // Predicated region
      $region21: #{forward_warp_pallas.1} parent=5 // pred_check
        %p131 = pneg %p130
      $region22: #{forward_warp_pallas.1} parent=5 // pred_check_branch
        %133 = sbr.rel (%p131) target = $region24
      $region23: #{forward_warp_pallas.1} parent=5 // pred_region
        _
      $region24: #{forward_warp_pallas.1} parent=5 // pred_fallthru
        _
      %p134 = scmp.le.s32.totalorder 1, %s13
      %p135 = scmp.lt.s32.totalorder %s13, 5
      %p136 = pnand %p134, %p135
      %p137 = pneg %p136
      // Predicated region
      $region25: #{forward_warp_pallas.1} parent=5 // pred_check
        _
      $region26: #{forward_warp_pallas.1} parent=5 // pred_check_branch
        %139 = sbr.rel (%p136) target = $region28
      $region27: #{forward_warp_pallas.1} parent=5 // pred_region
        %s140 = ssub.s32 %s13, 1
        // Predicated region
        $region29: #{forward_warp_pallas.1} parent=27 // pred_check
          %p141 = pneg %p46
        $region30: #{forward_warp_pallas.1} parent=27 // pred_check_branch
          %143 = sbr.rel (%p141) target = $region32
        $region31: #{forward_warp_pallas.1} parent=27 // pred_region
          %145 = dma.done [#allocation4], 16
        $region32: #{forward_warp_pallas.1} parent=27 // pred_fallthru
          _
        // Predicated region
        $region33: #{forward_warp_pallas.1} parent=27 // pred_check
          %p146 = pneg %p67
        $region34: #{forward_warp_pallas.1} parent=27 // pred_check_branch
          %148 = sbr.rel (%p146) target = $region36
        $region35: #{forward_warp_pallas.1} parent=27 // pred_region
          %150 = dma.done [#allocation6], 16
        $region36: #{forward_warp_pallas.1} parent=27 // pred_fallthru
          _
        %151 = sfence
        %p152 = pneg %p46
        %p153 = pneg %p43
        %p154 = pneg %p67
        %p155 = pneg %p64
        %p156 = pneg %p95
        %p157 = pneg %p92
        %s158 = sand.u32 %s82, 1
        %s159 = scalar_lea.sflag [#allocation3], %s158
        %s160 = sand.u32 %s82, 1
        %s161 = smul.addr %s160, 8
        %s162 = scalar_lea.vmem [#allocation7], %s161
        %s163 = smul.u32 %s23, 8
        %s164 = scvt.s32.f32 %s163
        %v165 = vlaneseq
        %v166 = vshrl.u32 %v165, 7
        %v167 = vstv %s163
        %v168 = vadd.s32 %v166, %v167
        %v169 = vcvt.s32.f32 %v168
        %v170 = vlaneseq
        %v171 = vand.u32 %v170, 127
        %v172 = vcvt.s32.f32 %v171
        %vm173 = vcmask 130048
        %174 = vst.msk [vmem:[%s162] sm:$0xff] %vm173, 0.0
        %s175 = sld [smem:[#allocation2 + %s22]]
        // While loop
        $region37: #{forward_warp_pallas.1} parent=27 // loop_pre_header
          _
        $region38: #{forward_warp_pallas.1} parent=27 // loop_header
          %s177 = sphi 0, %s179
          %p178 = scmp.ge.s32.totalorder %s177, %s175
        $region39: #{forward_warp_pallas.1} parent=27 // loop_header_branch
          %181 = sbr.rel (%p178) target = $region43
        $region40: #{forward_warp_pallas.1} parent=27 // loop_body
          %s182 = smul.u32 %s22, 8
          %s183 = sadd.s32 %s182, %s177
          %s184 = smul.u32 %s183, 4
          %s185 = sld [smem:[#allocation5 + %s184]]
          %s186 = sadd.s32 %s184, 1
          %s187 = sld [smem:[#allocation5 + %s186]]
          %s188 = sadd.s32 %s184, 2
          %s189 = sld [smem:[#allocation5 + %s188]]
          %s190 = sadd.s32 %s184, 3
          %s191 = sld [smem:[#allocation5 + %s190]]
          %s192 = sadd.f32 %s187, %s189
          %p193 = scmp.ge.f32.partialorder %s192, %s164
          %s194 = ssub.f32 %s187, %s189
          %s195 = sadd.f32 %s164, 7.0
          %p196 = scmp.le.f32.partialorder %s194, %s195
          %p197 = pnand %p193, %p196
          %p198 = pneg %p197
          %s199 = ssub.f32 %s185, %s189
          %p200 = scmp.le.f32.partialorder %s199, 15.0
          %p201 = pnand %p198, %p200
          %p202 = pneg %p201
          // Predicated region
          $region44: #{forward_warp_pallas.1} parent=40 // pred_check
            _
          $region45: #{forward_warp_pallas.1} parent=40 // pred_check_branch
            %204 = sbr.rel (%p201) target = $region47
          $region46: #{forward_warp_pallas.1} parent=40 // pred_region
            %v205 = vstv %s187
            %v206 = vsub.f32 %v169, %v205
            %v207 = vstv %s185
            %v208 = vsub.f32 %v172, %v207
            %v209 = vmul.f32 %v206, %v206
            %v210 = vsub.f32 0.0, %v209
            %v211 = vstv %s191
            %v212 = vmul.f32 %v210, %v211
            %v213 = vmul.f32 %v212, 1.442695
            %v214 = vpow.pop %v213
            %v215 = vmul.f32 %v208, %v208
            %v216 = vsub.f32 0.0, %v215
            %v217 = vmul.f32 %v216, %v211
            %v218 = vmul.f32 %v217, 1.442695
            %v219 = vpow.pop %v218
            %v220 = vmul.f32 %v214, %v219
            %v221 = vand.u32 2147483647, %v206
            %v222 = vstv %s189
            %vm223 = vcmp.le.f32.partialorder %v221, %v222
            %v224 = vand.u32 2147483647, %v208
            %vm225 = vcmp.le.f32.partialorder %v224, %v222
            %v226 = vsel %vm223, 1, 0
            %vm227 = vcmp.eq.s32.totalorder %v226, 1
            %v228 = vsel %vm225, 1, 0
            %vm229 = vcmp.eq.s32.totalorder %v228, 1
            %vm230 = vmand %vm227, %vm229
            %vm231 = vcmp.ge.f32.partialorder %v220, 2e-15
            %vm232 = vmand %vm230, %vm231
            %v233 = vsel %vm232, %v220, 0.0
            %v234 = vld [vmem:[%s162] sm:$0xff]
            %v235 = vmax.f32 %v234, %v233
            %236 = vst.msk [vmem:[%s162] sm:$0xff] %vm173, %v235
          $region47: #{forward_warp_pallas.1} parent=40 // pred_fallthru
            _
        $region41: #{forward_warp_pallas.1} parent=27 // loop_footer
          %s179 = sadd.s32 %s177, 1
        $region42: #{forward_warp_pallas.1} parent=27 // loop_footer_branch
          %176 = sbr.rel target = $region38
        $region43: #{forward_warp_pallas.1} parent=27 // loop_exit
          _
        %s237 = sand.u32 %s82, 1
        %s238 = scalar_lea.sflag [#allocation3], %s237
        %s239 = sand.u32 %s82, 1
        %s240 = smul.addr %s239, 8
        %s241 = scalar_lea.vmem [#allocation7], %s240
        // Predicated region
        $region48: #{forward_warp_pallas.1} parent=27 // pred_check
          %p242 = pneg %p92
        $region49: #{forward_warp_pallas.1} parent=27 // pred_check_branch
          %244 = sbr.rel (%p242) target = $region51
        $region50: #{forward_warp_pallas.1} parent=27 // pred_region
          %246 = vsyncadd %s238, 0
          %s247 = smul.addr %s22, 2
          %s248 = sadd.s32 %s23, %s247
          %s249 = smul.addr %s248, 8
          %s250 = scalar_lea.hbm %s2, %s249
          %s252 = sshll.u32 %s241, 4
          %s253 = int_to_ptr.vmem [resolvable:$true] %s252
          %s254 = sshll.u32 %s250, 4
          %s255 = int_to_ptr.hbm [resolvable:$true] %s254
          %257 = dma.vmem_to_hbm [thread:$0]  %s253, 128, %s255, %s238
        $region51: #{forward_warp_pallas.1} parent=27 // pred_fallthru
          _
      $region28: #{forward_warp_pallas.1} parent=5 // pred_fallthru
        _
      %p258 = scmp.le.s32.totalorder 2, %s13
      // Predicated region
      $region52: #{forward_warp_pallas.1} parent=5 // pred_check
        %p259 = pneg %p258
      $region53: #{forward_warp_pallas.1} parent=5 // pred_check_branch
        %261 = sbr.rel (%p259) target = $region55
      $region54: #{forward_warp_pallas.1} parent=5 // pred_region
        %s262 = ssub.s32 %s13, 2
        // Predicated region
        $region56: #{forward_warp_pallas.1} parent=54 // pred_check
          %p263 = pneg %p98
        $region57: #{forward_warp_pallas.1} parent=54 // pred_check_branch
          %265 = sbr.rel (%p263) target = $region59
        $region58: #{forward_warp_pallas.1} parent=54 // pred_region
          %s266 = sand.u32 %s83, 1
          %s267 = scalar_lea.sflag [#allocation3], %s266
          %s268 = sand.u32 %s83, 1
          %s269 = smul.addr %s268, 8
          %s270 = scalar_lea.vmem [#allocation7], %s269
          %272 = dma.done %s267, 128
        $region59: #{forward_warp_pallas.1} parent=54 // pred_fallthru
          _
      $region55: #{forward_warp_pallas.1} parent=5 // pred_fallthru
        _
    $region6: #{forward_warp_pallas.1} parent=1 // loop_footer
      %s17 = sadd.s32 1, %s13
    $region7: #{forward_warp_pallas.1} parent=1 // loop_footer_branch
      %12 = sbr.rel target = $region3
    $region8: #{forward_warp_pallas.1} parent=1 // loop_exit
      _
    %273 = vsyncpa [#allocation3], 1
    %s274 = scalar_lea.sflag [#allocation3], 1
    %275 = vsyncpa %s274, 1
    %276 = vsyncpa [#allocation4], 1
    %s277 = scalar_lea.sflag [#allocation4], 1
    %278 = vsyncpa %s277, 1
    %279 = vsyncpa [#allocation6], 1

</llo_original>
